<compile_context>
chip_gen: v5e
topology: v5e:2x2
jax: 0.10.0
libtpu: 0.0.40
codegen_flags: <defaults>
</compile_context>

<pallas_src>
import functools

import jax
import jax.numpy as jnp
from jax.experimental import pallas as pl
from jax.experimental.pallas import tpu as pltpu

# ---- small, module-consistent shapes ----------------------------------------
B = 2     # batch
L = 16    # sequence length (conv/pool spatial axis)
C = 32    # channels (c_in = d_model)
EPS = 1e-5  # nn.BatchNorm1d default eps


def _conv_layer_kernel(x_ref, wps_ref, out_ref, xcat_ref, ypad_ref,
                       *, b_sz, seq, c_in, blk):
    l_out = (seq - 1) // 2 + 1

    # --- stage the 3 circularly shifted taps into the (B*L, 3C) scratch ------
    # Per-batch rank-2 XLU rolls (sublane rotations); no lane concatenation.
    for b in range(b_sz):
        xb = x_ref[b]                                            # (L, C)
        r0 = b * seq
        xcat_ref[r0:r0 + seq, 0 * c_in:1 * c_in] = pltpu.roll(xb, shift=1, axis=0)
        xcat_ref[r0:r0 + seq, 1 * c_in:2 * c_in] = xb
        xcat_ref[r0:r0 + seq, 2 * c_in:3 * c_in] = pltpu.roll(xb, shift=seq - 1, axis=0)

    # --- fused circular conv (+bias) + BatchNorm(eval): one MXU matmul -------
    # wps rows [0:3C)  = BN-scaled conv taps, row 3C = fused (bias+BN) shift.
    y = jnp.dot(xcat_ref[...], wps_ref[0:3 * c_in, :],
                preferred_element_type=jnp.float32)              # (B*L, C)
    y = y + wps_ref[3 * c_in:3 * c_in + 1, :]                    # fused bias + BN shift
    y = jnp.where(y > 0, y, jnp.exp(y) - 1.0)                    # ELU(alpha=1)
    # TODO(synk): expm1 would be marginally more accurate near 0-; kept exp-1.

    # --- MaxPool1d(kernel=3, stride=2, padding=1) along L --------------------
    # Per-batch -inf halo rows + three stride-2 sublane reads + elementwise max.
    neg = jnp.full((1, c_in), -jnp.inf, jnp.float32)
    for b in range(b_sz):
        p0 = b * blk
        ypad_ref[p0:p0 + 1, :] = neg                             # left halo (-inf)
        ypad_ref[p0 + seq + 1:p0 + seq + 2, :] = neg             # right halo (-inf)
        ypad_ref[p0 + 1:p0 + seq + 1, :] = y[b * seq:(b + 1) * seq, :]

        s0 = ypad_ref[pl.ds(p0 + 0, l_out, stride=2), :]         # y[2j-1] (halo at j=0)
        s1 = ypad_ref[pl.ds(p0 + 1, l_out, stride=2), :]         # y[2j]
        s2 = ypad_ref[pl.ds(p0 + 2, l_out, stride=2), :]         # y[2j+1] (halo at top)
        out_ref[b * l_out:(b + 1) * l_out, :] = jnp.maximum(jnp.maximum(s0, s1), s2)


def pack_conv_layer_params(conv_w, conv_b, bn_gamma, bn_beta, bn_mean, bn_var):
    """One-time packing (call at init, NOT per forward).

    conv_w: (C_out, C_in, 3) PyTorch Conv1d layout.
    Returns wps: (3C+1, C) f32 — BN-scaled taps stacked on the row axis plus a
    final fused shift row, so the kernel does  x_cat @ wps[:3C] + wps[3C]."""
    s = bn_gamma * jax.lax.rsqrt(bn_var + EPS)                   # (C,)
    wp = jnp.concatenate(
        [conv_w[:, :, 0].T, conv_w[:, :, 1].T, conv_w[:, :, 2].T], axis=0)
    wp = wp * s[None, :]                                         # fold BN scale into W
    shift = (conv_b - bn_mean) * s + bn_beta                     # fused bias + BN shift
    return jnp.concatenate([wp, shift[None, :]], axis=0).astype(jnp.float32)


def conv_layer(x, wps):
    """x: (B, L, C) f32, wps: packed (3C+1, C) params from pack_conv_layer_params.
    Returns (B, L_out, C) with L_out = floor((L + 2 - 3)/2) + 1."""
    b_sz, seq, c_in = x.shape
    l_out = (seq - 1) // 2 + 1
    blk = -(-(seq + 2) // 8) * 8   # per-batch halo block, rounded for sublane alignment

    kernel = functools.partial(_conv_layer_kernel, b_sz=b_sz, seq=seq,
                               c_in=c_in, blk=blk)

    out2d = pl.pallas_call(
        kernel,
        out_shape=jax.ShapeDtypeStruct((b_sz * l_out, c_in), jnp.float32),
        grid_spec=pltpu.PrefetchScalarGridSpec(
            num_scalar_prefetch=0,
            grid=(1,),  # whole problem in one invocation (fits VMEM easily)
            in_specs=[
                pl.BlockSpec((b_sz, seq, c_in), lambda i: (0, 0, 0)),       # x
                pl.BlockSpec((3 * c_in + 1, c_in), lambda i: (0, 0)),       # packed W+shift
            ],
            out_specs=pl.BlockSpec((b_sz * l_out, c_in), lambda i: (0, 0)),
            scratch_shapes=[
                pltpu.VMEM((b_sz * seq, 3 * c_in), jnp.float32),            # x_cat staging
                pltpu.VMEM((b_sz * blk, c_in), jnp.float32),                # -inf halo pad
            ],
        ),
        compiler_params=pltpu.CompilerParams(dimension_semantics=("arbitrary",)),
    )(x, wps)
    return out2d.reshape(b_sz, l_out, c_in)


def conv_layer_ref(x, conv_w, conv_b, bn_gamma, bn_beta, bn_mean, bn_var):
    """Pure-JAX reference mirroring the PyTorch forward (BatchNorm in eval mode)."""
    b_sz, seq, c_in = x.shape
    xc = jnp.transpose(x, (0, 2, 1))                             # x.permute(0, 2, 1)
    xp = jnp.concatenate([xc[:, :, -1:], xc, xc[:, :, :1]], axis=-1)  # circular pad 1
    y = jax.lax.conv_general_dilated(
        xp, conv_w, window_strides=(1,), padding="VALID",
        dimension_numbers=("NCH", "OIH", "NCH"))
    y = y + conv_b[None, :, None]
    y = ((y - bn_mean[None, :, None])
         / jnp.sqrt(bn_var[None, :, None] + EPS)
         * bn_gamma[None, :, None] + bn_beta[None, :, None])
    y = jnp.where(y > 0, y, jnp.exp(y) - 1.0)                    # ELU(alpha=1)
    yp = jnp.pad(y, ((0, 0), (0, 0), (1, 1)), constant_values=-jnp.inf)
    l_out = (seq - 1) // 2 + 1
    pooled = jnp.stack(
        [jnp.max(yp[:, :, 2 * j:2 * j + 3], axis=-1) for j in range(l_out)], axis=-1)
    return jnp.transpose(pooled, (0, 2, 1))                      # (B, L_out, C)


if __name__ == "__main__":
    key = jax.random.PRNGKey(0)
    kx, kw, kb, kg, kbe, km, kv = jax.random.split(key, 7)
    x = jax.random.normal(kx, (B, L, C), jnp.float32)

    conv_w = 0.1 * jax.random.normal(kw, (C, C, 3), jnp.float32)   # Conv1d weight (O,I,K)
    conv_b = 0.1 * jax.random.normal(kb, (C,), jnp.float32)
    bn_gamma = 1.0 + 0.1 * jax.random.normal(kg, (C,), jnp.float32)
    bn_beta = 0.1 * jax.random.normal(kbe, (C,), jnp.float32)
    bn_mean = 0.1 * jax.random.normal(km, (C,), jnp.float32)       # running_mean
    bn_var = 0.5 + jax.random.uniform(kv, (C,), jnp.float32)       # running_var

    # One-time parameter packing (init-time; off the per-call path).
    wps = jax.block_until_ready(
        pack_conv_layer_params(conv_w, conv_b, bn_gamma, bn_beta, bn_mean, bn_var))

    out = conv_layer(x, wps)
    out = jax.block_until_ready(out)

    ref = conv_layer_ref(x, conv_w, conv_b, bn_gamma, bn_beta, bn_mean, bn_var)
    l_out = (L - 1) // 2 + 1
    assert out.shape == (B, l_out, C), out.shape
    max_err = float(jnp.max(jnp.abs(out - ref)))
    assert jnp.allclose(out, ref, atol=1e-4, rtol=1e-4), f"mismatch, max err {max_err}"

    print("KERNEL_OK")
</pallas_src>

<mosaic_0001>
module attributes {stable_mosaic.version = 11 : i64} {
  func.func @_conv_layer_kernel(%arg0: i32, %arg1: memref<2x16x32xf32, #tpu.memory_space<vmem>>, %arg2: memref<97x32xf32, #tpu.memory_space<vmem>>, %arg3: memref<16x32xf32, #tpu.memory_space<vmem>>, %arg4: memref<32x96xf32, #tpu.memory_space<vmem>>, %arg5: memref<48x32xf32, #tpu.memory_space<vmem>>) attributes {dimension_semantics = [#tpu.dimension_semantics<arbitrary>], iteration_bounds = array<i64: 1>, scalar_prefetch = 0 : i64, scratch_operands = 2 : i64, tpu.core_type = #tpu.core_type<tc>, window_params = [{pipeline_mode = #tpu.pipeline_mode<synchronous>, transform_indices = @transform_0, window_bounds = array<i64: 2, 16, 32>}, {pipeline_mode = #tpu.pipeline_mode<synchronous>, transform_indices = @transform_1, window_bounds = array<i64: 97, 32>}, {pipeline_mode = #tpu.pipeline_mode<synchronous>, transform_indices = @transform_2, window_bounds = array<i64: 16, 32>}]} {
    %c0 = arith.constant 0 : index
    %c0_0 = arith.constant 0 : index
    %c0_1 = arith.constant 0 : index
    %0 = vector.load %arg1[%c0, %c0_0, %c0_1] : memref<2x16x32xf32, #tpu.memory_space<vmem>>, vector<1x16x32xf32>
    %1 = vector.shape_cast %0 : vector<1x16x32xf32> to vector<16x32xf32>
    %c1_i32 = arith.constant 1 : i32
    %2 = tpu.dynamic_rotate %1 by %c1_i32 dim 0 : vector<16x32xf32>, i32 -> vector<16x32xf32>
    %c0_2 = arith.constant 0 : index
    %c0_3 = arith.constant 0 : index
    %3 = vector.load %arg4[%c0_2, %c0_3] : memref<32x96xf32, #tpu.memory_space<vmem>>, vector<16x32xf32>
    tpu.vector_store %arg4[%c0_2, %c0_3], %2 {strides = array<i32>} : memref<32x96xf32, #tpu.memory_space<vmem>>, vector<16x32xf32>,
    %c0_4 = arith.constant 0 : index
    %c32 = arith.constant 32 : index
    %4 = vector.load %arg4[%c0_4, %c32] : memref<32x96xf32, #tpu.memory_space<vmem>>, vector<16x32xf32>
    tpu.vector_store %arg4[%c0_4, %c32], %1 {strides = array<i32>} : memref<32x96xf32, #tpu.memory_space<vmem>>, vector<16x32xf32>,
    %c15_i32 = arith.constant 15 : i32
    %5 = tpu.dynamic_rotate %1 by %c15_i32 dim 0 : vector<16x32xf32>, i32 -> vector<16x32xf32>
    %c0_5 = arith.constant 0 : index
    %c64 = arith.constant 64 : index
    %6 = vector.load %arg4[%c0_5, %c64] : memref<32x96xf32, #tpu.memory_space<vmem>>, vector<16x32xf32>
    tpu.vector_store %arg4[%c0_5, %c64], %5 {strides = array<i32>} : memref<32x96xf32, #tpu.memory_space<vmem>>, vector<16x32xf32>,
    %c1 = arith.constant 1 : index
    %c0_6 = arith.constant 0 : index
    %c0_7 = arith.constant 0 : index
    %7 = vector.load %arg1[%c1, %c0_6, %c0_7] : memref<2x16x32xf32, #tpu.memory_space<vmem>>, vector<1x16x32xf32>
    %8 = vector.shape_cast %7 : vector<1x16x32xf32> to vector<16x32xf32>
    %c1_i32_8 = arith.constant 1 : i32
    %9 = tpu.dynamic_rotate %8 by %c1_i32_8 dim 0 : vector<16x32xf32>, i32 -> vector<16x32xf32>
    %c16 = arith.constant 16 : index
    %c0_9 = arith.constant 0 : index
    %10 = vector.load %arg4[%c16, %c0_9] : memref<32x96xf32, #tpu.memory_space<vmem>>, vector<16x32xf32>
    tpu.vector_store %arg4[%c16, %c0_9], %9 {strides = array<i32>} : memref<32x96xf32, #tpu.memory_space<vmem>>, vector<16x32xf32>,
    %c16_10 = arith.constant 16 : index
    %c32_11 = arith.constant 32 : index
    %11 = vector.load %arg4[%c16_10, %c32_11] : memref<32x96xf32, #tpu.memory_space<vmem>>, vector<16x32xf32>
    tpu.vector_store %arg4[%c16_10, %c32_11], %8 {strides = array<i32>} : memref<32x96xf32, #tpu.memory_space<vmem>>, vector<16x32xf32>,
    %c15_i32_12 = arith.constant 15 : i32
    %12 = tpu.dynamic_rotate %8 by %c15_i32_12 dim 0 : vector<16x32xf32>, i32 -> vector<16x32xf32>
    %c16_13 = arith.constant 16 : index
    %c64_14 = arith.constant 64 : index
    %13 = vector.load %arg4[%c16_13, %c64_14] : memref<32x96xf32, #tpu.memory_space<vmem>>, vector<16x32xf32>
    tpu.vector_store %arg4[%c16_13, %c64_14], %12 {strides = array<i32>} : memref<32x96xf32, #tpu.memory_space<vmem>>, vector<16x32xf32>,
    %c0_15 = arith.constant 0 : index
    %c0_16 = arith.constant 0 : index
    %14 = vector.load %arg4[%c0_15, %c0_16] : memref<32x96xf32, #tpu.memory_space<vmem>>, vector<32x96xf32>
    %c0_17 = arith.constant 0 : index
    %c0_18 = arith.constant 0 : index
    %15 = vector.load %arg2[%c0_17, %c0_18] : memref<97x32xf32, #tpu.memory_space<vmem>>, vector<96x32xf32>
    %cst = arith.constant dense<0.000000e+00> : vector<32x32xf32>
    %16 = tpu.matmul %14, %15, %cst {dimension_numbers = #tpu.dot_dimension_numbers<[1], [0], [0], [1], [0, 0, 1, 1], [], []>} : vector<32x96xf32>, vector<96x32xf32>, vector<32x32xf32> -> vector<32x32xf32>
    %c96 = arith.constant 96 : index
    %c0_19 = arith.constant 0 : index
    %17 = vector.load %arg2[%c96, %c0_19] : memref<97x32xf32, #tpu.memory_space<vmem>>, vector<1x32xf32>
    %18 = vector.broadcast %17 : vector<1x32xf32> to vector<32x32xf32>
    %19 = arith.addf %16, %18 : vector<32x32xf32>
    %cst_20 = arith.constant 0.000000e+00 : f32
    %20 = vector.broadcast %cst_20 : f32 to vector<32x32xf32>
    %21 = arith.cmpf ogt, %19, %20 : vector<32x32xf32>
    %22 = math.exp %19 : vector<32x32xf32>
    %cst_21 = arith.constant 1.000000e+00 : f32
    %23 = vector.broadcast %cst_21 : f32 to vector<32x32xf32>
    %24 = arith.subf %22, %23 : vector<32x32xf32>
    %25 = arith.select %21, %19, %24 : vector<32x32xi1>, vector<32x32xf32>
    %cst_22 = arith.constant 0xFF800000 : f32
    %26 = vector.broadcast %cst_22 : f32 to vector<1x32xf32>
    %c0_23 = arith.constant 0 : index
    %c0_24 = arith.constant 0 : index
    %27 = vector.load %arg5[%c0_23, %c0_24] : memref<48x32xf32, #tpu.memory_space<vmem>>, vector<1x32xf32>
    tpu.vector_store %arg5[%c0_23, %c0_24], %26 {strides = array<i32>} : memref<48x32xf32, #tpu.memory_space<vmem>>, vector<1x32xf32>,
    %c17 = arith.constant 17 : index
    %c0_25 = arith.constant 0 : index
    %28 = vector.load %arg5[%c17, %c0_25] : memref<48x32xf32, #tpu.memory_space<vmem>>, vector<1x32xf32>
    tpu.vector_store %arg5[%c17, %c0_25], %26 {strides = array<i32>} : memref<48x32xf32, #tpu.memory_space<vmem>>, vector<1x32xf32>,
    %29 = vector.extract_strided_slice %25 {offsets = [0, 0], sizes = [16, 32], strides = [1, 1]} : vector<32x32xf32> to vector<16x32xf32>
    %c1_26 = arith.constant 1 : index
    %c0_27 = arith.constant 0 : index
    %30 = vector.load %arg5[%c1_26, %c0_27] : memref<48x32xf32, #tpu.memory_space<vmem>>, vector<16x32xf32>
    tpu.vector_store %arg5[%c1_26, %c0_27], %29 {strides = array<i32>} : memref<48x32xf32, #tpu.memory_space<vmem>>, vector<16x32xf32>,
    %c0_28 = arith.constant 0 : index
    %c0_29 = arith.constant 0 : index
    %31 = tpu.strided_load %arg5[%c0_28, %c0_29] {strides = array<i32: 2, 1>} : memref<48x32xf32, #tpu.memory_space<vmem>>, vector<8x32xf32>
    %c1_30 = arith.constant 1 : index
    %c0_31 = arith.constant 0 : index
    %32 = tpu.strided_load %arg5[%c1_30, %c0_31] {strides = array<i32: 2, 1>} : memref<48x32xf32, #tpu.memory_space<vmem>>, vector<8x32xf32>
    %c2 = arith.constant 2 : index
    %c0_32 = arith.constant 0 : index
    %33 = tpu.strided_load %arg5[%c2, %c0_32] {strides = array<i32: 2, 1>} : memref<48x32xf32, #tpu.memory_space<vmem>>, vector<8x32xf32>
    %34 = arith.maximumf %31, %32 : vector<8x32xf32>
    %35 = arith.maximumf %34, %33 : vector<8x32xf32>
    %c0_33 = arith.constant 0 : index
    %c0_34 = arith.constant 0 : index
    %36 = vector.load %arg3[%c0_33, %c0_34] : memref<16x32xf32, #tpu.memory_space<vmem>>, vector<8x32xf32>
    tpu.vector_store %arg3[%c0_33, %c0_34], %35 {strides = array<i32>} : memref<16x32xf32, #tpu.memory_space<vmem>>, vector<8x32xf32>,
    %c24 = arith.constant 24 : index
    %c0_35 = arith.constant 0 : index
    %37 = vector.load %arg5[%c24, %c0_35] : memref<48x32xf32, #tpu.memory_space<vmem>>, vector<1x32xf32>
    tpu.vector_store %arg5[%c24, %c0_35], %26 {strides = array<i32>} : memref<48x32xf32, #tpu.memory_space<vmem>>, vector<1x32xf32>,
    %c41 = arith.constant 41 : index
    %c0_36 = arith.constant 0 : index
    %38 = vector.load %arg5[%c41, %c0_36] : memref<48x32xf32, #tpu.memory_space<vmem>>, vector<1x32xf32>
    tpu.vector_store %arg5[%c41, %c0_36], %26 {strides = array<i32>} : memref<48x32xf32, #tpu.memory_space<vmem>>, vector<1x32xf32>,
    %39 = vector.extract_strided_slice %25 {offsets = [16, 0], sizes = [16, 32], strides = [1, 1]} : vector<32x32xf32> to vector<16x32xf32>
    %c25 = arith.constant 25 : index
    %c0_37 = arith.constant 0 : index
    %40 = vector.load %arg5[%c25, %c0_37] : memref<48x32xf32, #tpu.memory_space<vmem>>, vector<16x32xf32>
    tpu.vector_store %arg5[%c25, %c0_37], %39 {strides = array<i32>} : memref<48x32xf32, #tpu.memory_space<vmem>>, vector<16x32xf32>,
    %c24_38 = arith.constant 24 : index
    %c0_39 = arith.constant 0 : index
    %41 = tpu.strided_load %arg5[%c24_38, %c0_39] {strides = array<i32: 2, 1>} : memref<48x32xf32, #tpu.memory_space<vmem>>, vector<8x32xf32>
    %c25_40 = arith.constant 25 : index
    %c0_41 = arith.constant 0 : index
    %42 = tpu.strided_load %arg5[%c25_40, %c0_41] {strides = array<i32: 2, 1>} : memref<48x32xf32, #tpu.memory_space<vmem>>, vector<8x32xf32>
    %c26 = arith.constant 26 : index
    %c0_42 = arith.constant 0 : index
    %43 = tpu.strided_load %arg5[%c26, %c0_42] {strides = array<i32: 2, 1>} : memref<48x32xf32, #tpu.memory_space<vmem>>, vector<8x32xf32>
    %44 = arith.maximumf %41, %42 : vector<8x32xf32>
    %45 = arith.maximumf %44, %43 : vector<8x32xf32>
    %c8 = arith.constant 8 : index
    %c0_43 = arith.constant 0 : index
    %46 = vector.load %arg3[%c8, %c0_43] : memref<16x32xf32, #tpu.memory_space<vmem>>, vector<8x32xf32>
    tpu.vector_store %arg3[%c8, %c0_43], %45 {strides = array<i32>} : memref<16x32xf32, #tpu.memory_space<vmem>>, vector<8x32xf32>,
    return
  }
  func.func @transform_0(%arg0: i32) -> (i32, i32, i32) {
    %c0_i32 = arith.constant 0 : i32
    %c0_i32_0 = arith.constant 0 : i32
    %c0_i32_1 = arith.constant 0 : i32
    %c0_i32_2 = arith.constant 0 : i32
    return %c0_i32, %c0_i32_0, %c0_i32_1 : i32, i32, i32
  }
  func.func @transform_1(%arg0: i32) -> (i32, i32) {
    %c0_i32 = arith.constant 0 : i32
    %c0_i32_0 = arith.constant 0 : i32
    %c0_i32_1 = arith.constant 0 : i32
    return %c0_i32, %c0_i32_0 : i32, i32
  }
  func.func @transform_2(%arg0: i32) -> (i32, i32) {
    %c0_i32 = arith.constant 0 : i32
    %c0_i32_0 = arith.constant 0 : i32
    %c0_i32_1 = arith.constant 0 : i32
    return %c0_i32, %c0_i32_0 : i32, i32
  }
}

</mosaic_0001>

<llo_original>
// kernel: tpu_custom_call.1
$region0: #{tpu_custom_call.1}
  #allocation0 [shape = 'u32[]', space=smem, size = 0x4, offset = 0x4, fixed_abs, tag = 'smem constant byte address 0x4 - core index']
  #allocation1 [shape = 'u32[72,128]{1,0:T(1,128)}', space=vmem, size = 0x9000, scoped, tag = 'internal scratch']
  #allocation2 [shape = 'f32[32,96]{1,0:T(8,128)}', space=vmem, size = 0x4000, scoped, tag = 'scratch operand']
  #allocation3 [shape = 'f32[48,32]{1,0:T(8,128)}', space=vmem, size = 0x6000, scoped, tag = 'scratch operand']
  %s0 = inlined_call_operand.vmem [shape: f32[2,16,32], index: 0, kind: input, shape index: {}]
  %s1 = inlined_call_operand.vmem [shape: f32[97,32], index: 1, kind: input, shape index: {}]
  %s2 = inlined_call_operand.hbm [shape: f32[16,32], index: 2, kind: output, shape index: {}]
  %s3 = sld [smem:[#allocation0]]
  $region18: #{tpu_custom_call.1} parent=0
    _
  %s5 = ssub.s32 1, %s3
  %s6 = scalar_select 0, %s5, %s3
  $region1: #{tpu_custom_call.1} parent=0
    #allocation4 [shape = 'u8[8192]{0}', space=vmem, size = 0x2000, scoped, tag = 'output window, operand 0, single buffered']
    #allocation5 [shape = 's32[1]{0}', space=sflag, size = 0x4, scoped, tag = 'scoped memory for tpu_custom_call.1']
    %7 = vsyncpa [#allocation5], 0
    // Predicated region
    $region2: #{tpu_custom_call.1} parent=1 // pred_check
      _
    $region3: #{tpu_custom_call.1} parent=1 // pred_check_branch
      %9 = sbr.rel (0) target = $region5
    $region4: #{tpu_custom_call.1} parent=1 // pred_region
      _
    $region5: #{tpu_custom_call.1} parent=1 // pred_fallthru
      _
    // Predicated region
    $region6: #{tpu_custom_call.1} parent=1 // pred_check
      _
    $region7: #{tpu_custom_call.1} parent=1 // pred_check_branch
      %11 = sbr.rel (0) target = $region9
    $region8: #{tpu_custom_call.1} parent=1 // pred_region
      _
    $region9: #{tpu_custom_call.1} parent=1 // pred_fallthru
      _
    %v12 = vld [vmem:[%s0] sm:$0xff]
    %v13 = vld [vmem:[%s0 + $0x8] sm:$0xff]
    %v14 = vrot.slane %v12, 7
    %v15 = vrot.slane %v13, 7
    %v16 = vlaneseq
    %v17 = vshrl.u32 %v16, 7
    %vm18 = vcmp.lt.s32.totalorder %v17, 1
    %v19 = vsel %vm18, %v14, %v15
    %v20 = vsel %vm18, %v15, %v14
    %vm21 = vcmask 261120
    %22 = vst.msk [vmem:[#allocation2] sm:$0xff] %vm21, %v20
    %23 = vst.msk [vmem:[#allocation2 + $0x8] sm:$0xff] %vm21, %v19
    %26 = vrot.lane.b32.xlu0 %v12, 32
    %v27 = vpop.permute.xlu0 %26
    %28 = vrot.lane.b32.xlu0 %v13, 32
    %v29 = vpop.permute.xlu0 %28
    %vm32 = vcmask 523520
    %33 = vst.msk [vmem:[#allocation2] sm:$0xff] %vm32, %v27
    %34 = vst.msk [vmem:[#allocation2 + $0x8] sm:$0xff] %vm32, %v29
    %v35 = vrot.slane %v12, 1
    %v36 = vrot.slane %v13, 1
    %vm37 = vcmp.lt.s32.totalorder %v17, 7
    %v38 = vsel %vm37, %v35, %v36
    %v39 = vsel %vm37, %v36, %v35
    %42 = vrot.lane.b32.xlu0 %v38, 64
    %v43 = vpop.permute.xlu0 %42
    %44 = vrot.lane.b32.xlu0 %v39, 64
    %v45 = vpop.permute.xlu0 %44
    %vm48 = vcmask 785920
    %49 = vst.msk [vmem:[#allocation2] sm:$0xff] %vm48, %v43
    %50 = vst.msk [vmem:[#allocation2 + $0x8] sm:$0xff] %vm48, %v45
    %s51 = scalar_lea.vmem %s0, 16
    %v52 = vld [vmem:[%s51] sm:$0xff]
    %v53 = vld [vmem:[%s51 + $0x8] sm:$0xff]
    %v54 = vrot.slane %v52, 7
    %v55 = vrot.slane %v53, 7
    %v56 = vsel %vm18, %v54, %v55
    %v57 = vsel %vm18, %v55, %v54
    %58 = vst.msk [vmem:[#allocation2 + $0x10] sm:$0xff] %vm21, %v57
    %59 = vst.msk [vmem:[#allocation2 + $0x18] sm:$0xff] %vm21, %v56
    %62 = vrot.lane.b32.xlu0 %v52, 32
    %v63 = vpop.permute.xlu0 %62
    %64 = vrot.lane.b32.xlu0 %v53, 32
    %v65 = vpop.permute.xlu0 %64
    %68 = vst.msk [vmem:[#allocation2 + $0x10] sm:$0xff] %vm32, %v63
    %69 = vst.msk [vmem:[#allocation2 + $0x18] sm:$0xff] %vm32, %v65
    %v70 = vrot.slane %v52, 1
    %v71 = vrot.slane %v53, 1
    %v72 = vsel %vm37, %v70, %v71
    %v73 = vsel %vm37, %v71, %v70
    %76 = vrot.lane.b32.xlu0 %v72, 64
    %v77 = vpop.permute.xlu0 %76
    %78 = vrot.lane.b32.xlu0 %v73, 64
    %v79 = vpop.permute.xlu0 %78
    %82 = vst.msk [vmem:[#allocation2 + $0x10] sm:$0xff] %vm48, %v77
    %83 = vst.msk [vmem:[#allocation2 + $0x18] sm:$0xff] %vm48, %v79
    %v84 = vld [vmem:[#allocation2] sm:$0xff]
    %v85 = vld [vmem:[#allocation2 + $0x8] sm:$0xff]
    %v86 = vld [vmem:[#allocation2 + $0x10] sm:$0xff]
    %v87 = vld [vmem:[#allocation2 + $0x18] sm:$0xff]
    %v88 = vld [vmem:[%s1] sm:$0xff]
    %v89 = vld [vmem:[%s1 + $0x8] sm:$0xff]
    %v90 = vld [vmem:[%s1 + $0x10] sm:$0xff]
    %v91 = vld [vmem:[%s1 + $0x18] sm:$0xff]
    %v92 = vld [vmem:[%s1 + $0x20] sm:$0xff]
    %v93 = vld [vmem:[%s1 + $0x28] sm:$0xff]
    %v94 = vld [vmem:[%s1 + $0x30] sm:$0xff]
    %v95 = vld [vmem:[%s1 + $0x38] sm:$0xff]
    %v96 = vld [vmem:[%s1 + $0x40] sm:$0xff]
    %v97 = vld [vmem:[%s1 + $0x48] sm:$0xff]
    %v98 = vld [vmem:[%s1 + $0x50] sm:$0xff]
    %v99 = vld [vmem:[%s1 + $0x58] sm:$0xff]
    %v100 = vld [vmem:[%s1 + $0x60] sm:$0x1]
    %v101 = vperm.slane %v100, 0
    %vm102 = vcmask 785408
    %v104 = vsel %vm102, %v84, 0
    %v107 = vsel %vm102, %v85, 0
    %v110 = vsel %vm102, %v86, 0
    %v113 = vsel %vm102, %v87, 0
    %115 = vmatpush.msra.mxu0 0.0
    %116 = vmatpush.msra.mxu0 0.0
    %117 = vmatpush.msra.mxu0 0.0
    %118 = vmatpush.msra.mxu0 0.0
    %119 = vmatpush.msra.mxu0 %v99
    %120 = vmatpush.msra.mxu0 %v98
    %121 = vmatpush.msra.mxu0 %v97
    %122 = vmatpush.msra.mxu0 %v96
    %123 = vmatpush.msra.mxu0 %v95
    %124 = vmatpush.msra.mxu0 %v94
    %125 = vmatpush.msra.mxu0 %v93
    %126 = vmatpush.msra.mxu0 %v92
    %127 = vmatpush.msra.mxu0 %v91
    %128 = vmatpush.msra.mxu0 %v90
    %129 = vmatpush.msra.mxu0 %v89
    %130 = vmatpush.msra.mxu0 %v88
    %131 = vmatmul.f32.gmra.mxu0 %v104
    %v132 = vpop.f32.mrf.mxu0
    %v133 = vadd.f32 %v101, %v132
    %134 = vmatmul.f32.gmra.mxu0 %v107
    %v135 = vpop.f32.mrf.mxu0
    %v136 = vadd.f32 %v101, %v135
    %137 = vmatmul.f32.gmra.mxu0 %v110
    %v138 = vpop.f32.mrf.mxu0
    %v139 = vadd.f32 %v101, %v138
    %140 = vmatmul.f32.gmra.mxu0 %v113
    %v141 = vpop.f32.mrf.mxu0
    %v142 = vadd.f32 %v101, %v141
    %143 = vdwg.mxu0
    %vm144 = vcmp.gt.f32.partialorder %v133, 0.0
    %vm145 = vcmp.gt.f32.partialorder %v136, 0.0
    %vm146 = vcmp.gt.f32.partialorder %v139, 0.0
    %vm147 = vcmp.gt.f32.partialorder %v142, 0.0
    %v148 = vmul.f32 %v133, 1.442695
    %v149 = vpow.pop %v148
    %v150 = vmul.f32 %v136, 1.442695
    %v151 = vpow.pop %v150
    %v152 = vmul.f32 %v139, 1.442695
    %v153 = vpow.pop %v152
    %v154 = vmul.f32 %v142, 1.442695
    %v155 = vpow.pop %v154
    %v156 = vsub.f32 %v149, 1.0
    %v157 = vsub.f32 %v151, 1.0
    %v158 = vsub.f32 %v153, 1.0
    %v159 = vsub.f32 %v155, 1.0
    %v160 = vsel %vm144, %v133, %v156
    %v161 = vsel %vm145, %v136, %v157
    %v162 = vsel %vm146, %v139, %v158
    %v163 = vsel %vm147, %v142, %v159
    %vm164 = vcmask 253952
    %165 = vst.msk [vmem:[#allocation3] sm:$0x1] %vm164, -inf
    %166 = vst.msk [vmem:[#allocation3 + $0x11] sm:$0x1] %vm164, -inf
    %167 = vst.msk [vmem:[#allocation3 + $0x1] sm:$0xff] %vm21, %v160
    %168 = vst.msk [vmem:[#allocation3 + $0x9] sm:$0xff] %vm21, %v161
    %v169 = vld [vmem:[#allocation3] ss:$2 sm:$0xff]
    %s170 = scalar_lea.vmem [#allocation3], 1
    %v171 = vld [vmem:[%s170] ss:$2 sm:$0xff]
    %s172 = scalar_lea.vmem [#allocation3], 2
    %v173 = vld [vmem:[%s172] ss:$2 sm:$0xff]
    %v174 = vmax.f32 %v169, %v171
    %v175 = vmax.f32 %v174, %v173
    %176 = vst.msk [vmem:[#allocation4] sm:$0xff] %vm21, %v175
    %177 = vst.msk [vmem:[#allocation3 + $0x18] sm:$0x1] %vm164, -inf
    %178 = vst.msk [vmem:[#allocation3 + $0x29] sm:$0x1] %vm164, -inf
    %179 = vst.msk [vmem:[#allocation3 + $0x19] sm:$0xff] %vm21, %v162
    %180 = vst.msk [vmem:[#allocation3 + $0x21] sm:$0xff] %vm21, %v163
    %s181 = scalar_lea.vmem [#allocation3], 24
    %v182 = vld [vmem:[%s181] ss:$2 sm:$0xff]
    %s183 = scalar_lea.vmem [#allocation3], 25
    %v184 = vld [vmem:[%s183] ss:$2 sm:$0xff]
    %s185 = scalar_lea.vmem [#allocation3], 26
    %v186 = vld [vmem:[%s185] ss:$2 sm:$0xff]
    %v187 = vmax.f32 %v182, %v184
    %v188 = vmax.f32 %v187, %v186
    %189 = vst.msk [vmem:[#allocation4 + $0x8] sm:$0xff] %vm21, %v188
    // Predicated region
    $region10: #{tpu_custom_call.1} parent=1 // pred_check
      _
    $region11: #{tpu_custom_call.1} parent=1 // pred_check_branch
      %191 = sbr.rel (0) target = $region13
    $region12: #{tpu_custom_call.1} parent=1 // pred_region
      %193 = vsyncadd [#allocation5], 0
      %s194 = sshll.u32 [#allocation4], 4
      %s195 = int_to_ptr.vmem [resolvable:$true] %s194
      %s196 = sshll.u32 %s2, 4
      %s197 = int_to_ptr.hbm [resolvable:$true] %s196
      %202 = dma.vmem_to_hbm [thread:$0]  %s195, 256, %s197, [#allocation5], 128, 128, 8
    $region13: #{tpu_custom_call.1} parent=1 // pred_fallthru
      _
    // Predicated region
    $region14: #{tpu_custom_call.1} parent=1 // pred_check
      _
    $region15: #{tpu_custom_call.1} parent=1 // pred_check_branch
      %204 = sbr.rel (0) target = $region17
    $region16: #{tpu_custom_call.1} parent=1 // pred_region
      %206 = dma.done [#allocation5], 256
    $region17: #{tpu_custom_call.1} parent=1 // pred_fallthru
      _
    %207 = vsyncpa [#allocation5], 1

</llo_original>
